<compile_context>
chip_gen: v5e
topology: v5e:2x2
jax: 0.10.0
libtpu: 0.0.40
codegen_flags: <defaults>
</compile_context>

<pallas_src>
import math

import jax
import jax.numpy as jnp
import numpy as np
from jax.experimental import pallas as pl
from jax.experimental.pallas import tpu as pltpu

LANES = 128


def _round_up(x, m):
    return (x + m - 1) // m * m


# ----------------------------------------------------------------------------
# Kernel 1: fused forward() hot path — x[node_type] * token[node_type]
#   tile_type_ref : SMEM (G,) int32  scalar prefetch (consumed by the index_map)
#   x_ref         : (TILE, 128)      lane-packed node-feature tile
#   tok_ref       : (1, 1, 128)      lane-packed prompt token for this tile
#   o_ref         : (TILE, 128)
# ----------------------------------------------------------------------------
def _prompt_mul_kernel(tile_type_ref, x_ref, tok_ref, o_ref):
    del tile_type_ref  # only used by the token index_map
    o_ref[...] = x_ref[...] * tok_ref[0]


def apply_prompt_fused(xs, tokens, ntypes, *, max_tile_rows=512):
    """Fused per-node-type broadcast multiply.

    xs:     dict node_type -> [N_t, D_t] node features (all same dtype, D_t | 128)
    tokens: dict node_type -> [1, D_t] prompt tokens
    Returns dict node_type -> x * token.
    """
    dtype = xs[ntypes[0]].dtype
    for nt in ntypes:
        assert xs[nt].dtype == dtype, "fused path expects a common dtype"
        assert LANES % xs[nt].shape[1] == 0, "feature dim must divide 128"

    # --- lane-pack each type: [N_t, D_t] -> [R_t, 128] (pad N_t if needed) ---
    packed, row_counts, pack_factors, npad_rows, tok_rows = [], [], [], [], []
    for nt in ntypes:
        x = xs[nt]
        n, d = x.shape
        p = LANES // d
        n_pad = _round_up(n, p)
        if n_pad != n:
            x = jnp.pad(x, ((0, n_pad - n), (0, 0)))
        r = (n_pad * d) // LANES
        packed.append(x.reshape(r, LANES))
        row_counts.append(r)
        pack_factors.append(p)
        npad_rows.append(n_pad)
        tok_rows.append(jnp.tile(tokens[nt].astype(dtype), (1, p)))  # (1, 128)

    # --- tile choice: large enough to amortize ~0.35 us/step pipeline cost,
    # clamped so tiny inputs don't blow up, dtype-aware sublane minimum -------
    itemsize = jnp.dtype(dtype).itemsize
    sub_min = max(8, 32 // itemsize)            # f32: 8, bf16: 16, int8: 32
    tile = max(sub_min, min(max_tile_rows, _round_up(max(row_counts), sub_min)))

    # --- pad each type's packed rows to a tile multiple and concatenate so
    # every grid step maps to exactly one node type --------------------------
    segs, seg_rows, tile_type = [], [], []
    for t, (blk, r) in enumerate(zip(packed, row_counts)):
        r_pad = _round_up(r, tile)
        if r_pad != r:
            blk = jnp.pad(blk, ((0, r_pad - r), (0, 0)))
        segs.append(blk)
        seg_rows.append(r_pad)
        tile_type.extend([t] * (r_pad // tile))
    x_all = jnp.concatenate(segs, axis=0)                    # (total_rows, 128)
    tok_table = jnp.stack(tok_rows, axis=0)                  # (T, 1, 128)
    tile_type = jnp.array(tile_type, dtype=jnp.int32)        # (grid,)

    total_rows = x_all.shape[0]
    grid = (total_rows // tile,)
    cost = pl.CostEstimate(
        flops=total_rows * LANES,
        transcendentals=0,
        bytes_accessed=(2 * total_rows * LANES + tok_table.size) * itemsize,
    )

    out = pl.pallas_call(
        _prompt_mul_kernel,
        out_shape=jax.ShapeDtypeStruct((total_rows, LANES), dtype),
        grid_spec=pltpu.PrefetchScalarGridSpec(
            num_scalar_prefetch=1,
            grid=grid,
            in_specs=[
                pl.BlockSpec((tile, LANES), lambda i, tmap: (i, 0)),
                pl.BlockSpec((1, 1, LANES), lambda i, tmap: (tmap[i], 0, 0)),
            ],
            out_specs=pl.BlockSpec((tile, LANES), lambda i, tmap: (i, 0)),
        ),
        compiler_params=pltpu.CompilerParams(
            dimension_semantics=("parallel",),
        ),
        cost_estimate=cost,
    )(tile_type, x_all, tok_table)

    # --- slice per-type results back out and undo the lane packing ----------
    results = {}
    off = 0
    for nt, r, r_pad, n_pad in zip(ntypes, row_counts, seg_rows, npad_rows):
        n, d = xs[nt].shape
        results[nt] = out[off:off + r].reshape(n_pad, d)[:n]
        off += r_pad
    return results


# ----------------------------------------------------------------------------
# Kernel 2: weighted_sum() — L2-normalize type_token, then
#   graph_embedding = sum_i type_embedding[i] * (token_norm[i] + 1)
# Done on the VPU (broadcast multiply) + XLU (sublane reduce); the problem is
# far too small for the MXU.
#   tok_ref : (T, 1)   type_token as a column (no in-kernel transpose)
#   emb_ref : (T, D)
#   o_ref   : (1, D)
# ----------------------------------------------------------------------------
def _weighted_sum_kernel(tok_ref, emb_ref, o_ref):
    tok = tok_ref[...].astype(jnp.float32)                       # (T, 1)
    norm = jnp.sqrt(jnp.sum(tok * tok, axis=0, keepdims=True))   # (1, 1)
    # F.normalize(p=2, dim=1): divide by max(norm, eps); then + 1
    w = tok / jnp.maximum(norm, 1e-12) + 1.0                     # (T, 1)
    out = jnp.sum(emb_ref[...].astype(jnp.float32) * w,
                  axis=0, keepdims=True)                         # (1, D)
    o_ref[...] = out.astype(o_ref.dtype)


def weighted_sum(type_token, type_embedding):
    """type_token: [1, T], type_embedding: [T, D] -> [1, D]."""
    t, d = type_embedding.shape
    assert type_token.shape == (1, t)
    tok_col = type_token.reshape(t, 1)
    return pl.pallas_call(
        _weighted_sum_kernel,
        out_shape=jax.ShapeDtypeStruct((1, d), type_embedding.dtype),
        grid_spec=pltpu.PrefetchScalarGridSpec(
            num_scalar_prefetch=0,
            grid=(1,),
            in_specs=[
                pl.BlockSpec((t, 1), lambda i: (0, 0)),
                pl.BlockSpec((t, d), lambda i: (0, 0)),
            ],
            out_specs=pl.BlockSpec((1, d), lambda i: (0, 0)),
        ),
    )(tok_col, type_embedding)


# ----------------------------------------------------------------------------
# Parameter init: torch.nn.init.kaiming_uniform_(a=0.01, mode='fan_in',
# nonlinearity='leaky_relu') on a (1, token_dim) tensor => fan_in = token_dim,
# gain = sqrt(2 / (1 + a^2)), bound = gain * sqrt(3 / fan_in), U(-bound, bound)
# ----------------------------------------------------------------------------
def kaiming_uniform(key, shape, a=0.01, dtype=jnp.float32):
    fan_in = shape[1]
    gain = math.sqrt(2.0 / (1.0 + a * a))
    bound = gain * math.sqrt(3.0 / fan_in)
    return jax.random.uniform(key, shape, dtype=dtype, minval=-bound, maxval=bound)


class HeteroPromptPallas:
    def __init__(self, token_dims, ntypes, key):
        self.token_dims = tuple(token_dims)
        self.ntypes = tuple(ntypes)
        keys = jax.random.split(key, len(token_dims) + 1)
        self.token_list = {
            nt: kaiming_uniform(k, (1, td))
            for nt, td, k in zip(self.ntypes, self.token_dims, keys[:-1])
        }
        self.type_token = kaiming_uniform(keys[-1], (1, len(token_dims)))

    def forward(self, graph_batch_ndata):
        """graph_batch_ndata: dict node_type -> [N_t, token_dim_t] features."""
        ref_dtype = graph_batch_ndata[self.ntypes[0]].dtype
        pallas_types = [
            nt for nt in self.ntypes
            if LANES % graph_batch_ndata[nt].shape[1] == 0
            and graph_batch_ndata[nt].dtype == ref_dtype
        ]
        other_types = [nt for nt in self.ntypes if nt not in pallas_types]

        out = {}
        if pallas_types:
            out.update(apply_prompt_fused(
                {nt: graph_batch_ndata[nt] for nt in pallas_types},
                {nt: self.token_list[nt] for nt in pallas_types},
                tuple(pallas_types)))
        # TODO(synk): feature dims that don't divide 128 (or mixed dtypes) fall
        # back to a plain XLA-fused broadcast multiply instead of lane packing.
        for nt in other_types:
            out[nt] = graph_batch_ndata[nt] * self.token_list[nt]
        return out

    def weighted_sum(self, type_embedding):
        """type_embedding: [T, D] (one row per node type)."""
        return weighted_sum(self.type_token, type_embedding)


# TODO(synk): DGL's dgl.unbatch/dgl.batch graph-structure plumbing has no
# Pallas equivalent; features are processed on the already-batched per-type
# tensors, which is numerically identical.

if __name__ == "__main__":
    key = jax.random.PRNGKey(0)
    k_mod, k_x0, k_x1, k_emb = jax.random.split(key, 4)

    token_dims = (32, 16)
    ntypes = ("paper", "author")
    model = HeteroPromptPallas(token_dims, ntypes, k_mod)

    # Small batched heterogeneous "graph": per-type node feature matrices.
    # Intentionally non-multiples of the pack factor to exercise padding.
    ndata = {
        "paper": jax.random.normal(k_x0, (19, 32), dtype=jnp.float32),
        "author": jax.random.normal(k_x1, (11, 16), dtype=jnp.float32),
    }

    out = model.forward(ndata)
    out = jax.tree_util.tree_map(jax.block_until_ready, out)

    # Reference check (pure broadcasting)
    for nt in ntypes:
        ref = np.asarray(ndata[nt]) * np.asarray(model.token_list[nt])
        np.testing.assert_allclose(np.asarray(out[nt]), ref, rtol=1e-6, atol=1e-6)

    # weighted_sum: T = len(token_dims) type embeddings of dim D = 32
    type_emb = jax.random.normal(k_emb, (len(token_dims), 32), dtype=jnp.float32)
    g_emb = jax.block_until_ready(model.weighted_sum(type_emb))

    tok = np.asarray(model.type_token)
    tok_n = tok / max(np.linalg.norm(tok), 1e-12)
    ref_g = np.zeros((32,), dtype=np.float64)
    for i in range(type_emb.shape[0]):
        ref_g += np.asarray(type_emb)[i] * (tok_n[0, i] + 1.0)
    np.testing.assert_allclose(np.asarray(g_emb)[0], ref_g, rtol=1e-5, atol=1e-5)

    print("KERNEL_OK")
</pallas_src>

<mosaic_0001>
module attributes {stable_mosaic.version = 11 : i64} {
  func.func @_prompt_mul_kernel(%arg0: i32, %arg1: memref<2xi32, #tpu.memory_space<smem>>, %arg2: memref<8x128xf32, #tpu.memory_space<vmem>>, %arg3: memref<1x1x128xf32, #tpu.memory_space<vmem>>, %arg4: memref<8x128xf32, #tpu.memory_space<vmem>>) attributes {dimension_semantics = [#tpu.dimension_semantics<parallel>], iteration_bounds = array<i64: 2>, scalar_prefetch = 1 : i64, scratch_operands = 0 : i64, tpu.core_type = #tpu.core_type<tc>, window_params = [{transform_indices = @transform_0, window_bounds = array<i64: 8, 128>}, {transform_indices = @transform_1, window_bounds = array<i64: 1, 1, 128>}, {transform_indices = @transform_2, window_bounds = array<i64: 8, 128>}]} {
    %c0 = arith.constant 0 : index
    %c0_0 = arith.constant 0 : index
    %0 = vector.load %arg2[%c0, %c0_0] : memref<8x128xf32, #tpu.memory_space<vmem>>, vector<8x128xf32>
    %c0_1 = arith.constant 0 : index
    %c0_2 = arith.constant 0 : index
    %c0_3 = arith.constant 0 : index
    %1 = vector.load %arg3[%c0_1, %c0_2, %c0_3] : memref<1x1x128xf32, #tpu.memory_space<vmem>>, vector<1x1x128xf32>
    %2 = vector.shape_cast %1 : vector<1x1x128xf32> to vector<1x128xf32>
    %3 = vector.broadcast %2 : vector<1x128xf32> to vector<8x128xf32>
    %4 = arith.mulf %0, %3 : vector<8x128xf32>
    %c0_4 = arith.constant 0 : index
    %c0_5 = arith.constant 0 : index
    %5 = vector.load %arg4[%c0_4, %c0_5] : memref<8x128xf32, #tpu.memory_space<vmem>>, vector<8x128xf32>
    tpu.vector_store %arg4[%c0_4, %c0_5], %4 {strides = array<i32>} : memref<8x128xf32, #tpu.memory_space<vmem>>, vector<8x128xf32>,
    return
  }
  func.func @transform_0(%arg0: i32, %arg1: memref<2xi32, #tpu.memory_space<smem>>) -> (i32, i32) {
    %c0_i32 = arith.constant 0 : i32
    %c0_i32_0 = arith.constant 0 : i32
    return %arg0, %c0_i32 : i32, i32
  }
  func.func @transform_1(%arg0: i32, %arg1: memref<2xi32, #tpu.memory_space<smem>>) -> (i32, i32, i32) {
    %0 = arith.index_cast %arg0 : i32 to index
    %1 = memref.load %arg1[%0] : memref<2xi32, #tpu.memory_space<smem>>
    %c0_i32 = arith.constant 0 : i32
    %c0_i32_0 = arith.constant 0 : i32
    %c0_i32_1 = arith.constant 0 : i32
    return %1, %c0_i32, %c0_i32_0 : i32, i32, i32
  }
  func.func @transform_2(%arg0: i32, %arg1: memref<2xi32, #tpu.memory_space<smem>>) -> (i32, i32) {
    %c0_i32 = arith.constant 0 : i32
    %c0_i32_0 = arith.constant 0 : i32
    return %arg0, %c0_i32 : i32, i32
  }
}

</mosaic_0001>

<llo_original>
// kernel: tpu_custom_call.1
$region0: #{tpu_custom_call.1}
  #allocation0 [shape = 'u32[]', space=smem, size = 0x4, offset = 0x4, fixed_abs, tag = 'smem constant byte address 0x4 - core index']
  #allocation1 [shape = 'u32[72,128]{1,0:T(1,128)}', space=vmem, size = 0x9000, scoped, tag = 'internal scratch']
  #allocation2 [shape = 's32[1]{0}', space=sflag, size = 0x4, scoped, tag = 'scoped memory for tpu_custom_call.1']
  #allocation3 [shape = 'u8[512]{0}', space=smem, size = 0x200, scoped, tag = 'prefetched SMEM operand 0']
  %s0 = inlined_call_operand.hbm [shape: s32[2], index: 0, kind: input, shape index: {}]
  %s1 = inlined_call_operand.hbm [shape: f32[16,128], index: 1, kind: input, shape index: {}]
  %s2 = inlined_call_operand.hbm [shape: f32[2,1,128], index: 2, kind: input, shape index: {}]
  %s3 = inlined_call_operand.hbm [shape: f32[16,128], index: 3, kind: output, shape index: {}]
  %s4 = sld [smem:[#allocation0]]
  $region49: #{tpu_custom_call.1} parent=0
    _
  %s6 = ssub.s32 1, %s4
  %s7 = scalar_select 0, %s6, %s4
  %s9 = sshll.u32 %s0, 4
  %s10 = int_to_ptr.hbm [resolvable:$true] %s9
  %12 = dma.hbm_to_smem %s10, 16, [#allocation3], [#allocation2]
  %14 = dma.done [#allocation2], 16
  %15 = sfence
  $region1: #{tpu_custom_call.1} parent=0
    #allocation4 [shape = 'u8[8192]{0}', space=vmem, size = 0x2000, scoped, tag = 'input window, operand 1']
    #allocation5 [shape = 's32[2]{0}', space=sflag, size = 0x8, scoped, tag = 'scoped memory for tpu_custom_call.1']
    #allocation6 [shape = 's32[2]{0}', space=sflag, size = 0x8, scoped, tag = 'scoped memory for tpu_custom_call.1']
    #allocation7 [shape = 'u8[1024]{0}', space=vmem, size = 0x400, scoped, tag = 'input window, operand 2']
    #allocation8 [shape = 's32[2]{0}', space=sflag, size = 0x8, scoped, tag = 'scoped memory for tpu_custom_call.1']
    #allocation9 [shape = 'u8[8192]{0}', space=vmem, size = 0x2000, scoped, tag = 'output window, operand 0']
    %16 = vsyncpa [#allocation5], 0
    %s17 = scalar_lea.sflag [#allocation5], 1
    %18 = vsyncpa %s17, 0
    %19 = vsyncpa [#allocation8], 0
    %s20 = scalar_lea.sflag [#allocation8], 1
    %21 = vsyncpa %s20, 0
    %22 = vsyncpa [#allocation6], 0
    %s23 = scalar_lea.sflag [#allocation6], 1
    %24 = vsyncpa %s23, 0
    loop: start=0, step=1, limit=4
    $region2: #{tpu_custom_call.1} parent=1 // loop_pre_header
      _
    $region3: #{tpu_custom_call.1} parent=1 // loop_header
      %s26 = sphi 0, %s30
      %p27 = scmp.ge.s32.totalorder %s26, 4
      %s36 = sphi 0, %s38
      %s39 = sphi 0, %s36
      %s40 = sphi 0, %s39
      %s56 = sphi 0, %s40
      %s64 = sphi 0, %s66
      %s67 = sphi 0, %s64
      %s68 = sphi 0, %s67
      %s84 = sphi 0, %s68
      %s90 = sphi 0, %s92
      %s93 = sphi 0, %s90
      %s94 = sphi 0, %s93
      %s110 = sphi 0, %s94
    $region4: #{tpu_custom_call.1} parent=1 // loop_header_branch
      %29 = sbr.rel (%p27) target = $region8
    $region5: #{tpu_custom_call.1} parent=1 // loop_body
      %s31 = ssub.s32 %s26, 1
      %s32 = ssub.s32 %s26, 2
      %s33 = sadd.s32 %s26, 1
      %s34 = ssub.s32 %s26, %s33
      %p35 = scmp.eq.s32.totalorder %s34, 0
      %s37 = sadd.s32 %s36, 1
      %s38 = scalar_select %p35, %s36, %s37
      %p41 = pneg %p35
      %p42 = scmp.eq.s32.totalorder %s26, 1
      %p43 = por %p41, %p42
      %p44 = scmp.ne.s32.totalorder %s36, %s39
      %p45 = scmp.eq.s32.totalorder %s26, 0
      %p46 = por %p44, %p45
      %p47 = scmp.ne.s32.totalorder %s36, %s39
      %p48 = scmp.eq.s32.totalorder %s31, 1
      %p49 = por %p47, %p48
      %p50 = scmp.ne.s32.totalorder %s39, %s40
      %p51 = scmp.eq.s32.totalorder %s31, 0
      %p52 = por %p50, %p51
      %p53 = scmp.ne.s32.totalorder %s39, %s40
      %p54 = scmp.eq.s32.totalorder %s32, 1
      %p55 = por %p53, %p54
      %p57 = scmp.ne.s32.totalorder %s40, %s56
      %p58 = scmp.eq.s32.totalorder %s32, 0
      %p59 = por %p57, %p58
      %s60 = sld [smem:[#allocation3 + %s26]]
      %s61 = sld [smem:[#allocation3 + %s33]]
      %s62 = ssub.s32 %s60, %s61
      %p63 = scmp.eq.s32.totalorder %s62, 0
      %s65 = sadd.s32 %s64, 1
      %s66 = scalar_select %p63, %s64, %s65
      %p69 = pneg %p63
      %p70 = scmp.eq.s32.totalorder %s26, 1
      %p71 = por %p69, %p70
      %p72 = scmp.ne.s32.totalorder %s64, %s67
      %p73 = scmp.eq.s32.totalorder %s26, 0
      %p74 = por %p72, %p73
      %p75 = scmp.ne.s32.totalorder %s64, %s67
      %p76 = scmp.eq.s32.totalorder %s31, 1
      %p77 = por %p75, %p76
      %p78 = scmp.ne.s32.totalorder %s67, %s68
      %p79 = scmp.eq.s32.totalorder %s31, 0
      %p80 = por %p78, %p79
      %p81 = scmp.ne.s32.totalorder %s67, %s68
      %p82 = scmp.eq.s32.totalorder %s32, 1
      %p83 = por %p81, %p82
      %p85 = scmp.ne.s32.totalorder %s68, %s84
      %p86 = scmp.eq.s32.totalorder %s32, 0
      %p87 = por %p85, %p86
      %s88 = ssub.s32 %s26, %s33
      %p89 = scmp.eq.s32.totalorder %s88, 0
      %s91 = sadd.s32 %s90, 1
      %s92 = scalar_select %p89, %s90, %s91
      %p95 = pneg %p89
      %p96 = scmp.eq.s32.totalorder %s26, 1
      %p97 = por %p95, %p96
      %p98 = scmp.ne.s32.totalorder %s90, %s93
      %p99 = scmp.eq.s32.totalorder %s26, 0
      %p100 = por %p98, %p99
      %p101 = scmp.ne.s32.totalorder %s90, %s93
      %p102 = scmp.eq.s32.totalorder %s31, 1
      %p103 = por %p101, %p102
      %p104 = scmp.ne.s32.totalorder %s93, %s94
      %p105 = scmp.eq.s32.totalorder %s31, 0
      %p106 = por %p104, %p105
      %p107 = scmp.ne.s32.totalorder %s93, %s94
      %p108 = scmp.eq.s32.totalorder %s32, 1
      %p109 = por %p107, %p108
      %p111 = scmp.ne.s32.totalorder %s94, %s110
      %p112 = scmp.eq.s32.totalorder %s32, 0
      %p113 = por %p111, %p112
      %p114 = scmp.le.s32.totalorder 1, %s26
      %p115 = scmp.lt.s32.totalorder %s26, 3
      %p116 = pnand %p114, %p115
      %p117 = pneg %p116
      // Predicated region
      $region9: #{tpu_custom_call.1} parent=5 // pred_check
        _
      $region10: #{tpu_custom_call.1} parent=5 // pred_check_branch
        %119 = sbr.rel (%p116) target = $region12
      $region11: #{tpu_custom_call.1} parent=5 // pred_region
        %s120 = ssub.s32 %s26, 1
      $region12: #{tpu_custom_call.1} parent=5 // pred_fallthru
        _
      %p121 = scmp.lt.s32.totalorder %s26, 2
      // Predicated region
      $region13: #{tpu_custom_call.1} parent=5 // pred_check
        %p122 = pneg %p121
      $region14: #{tpu_custom_call.1} parent=5 // pred_check_branch
        %124 = sbr.rel (%p122) target = $region16
      $region15: #{tpu_custom_call.1} parent=5 // pred_region
        // Predicated region
        $region17: #{tpu_custom_call.1} parent=15 // pred_check
          %p125 = pneg %p46
        $region18: #{tpu_custom_call.1} parent=15 // pred_check_branch
          %127 = sbr.rel (%p125) target = $region20
        $region19: #{tpu_custom_call.1} parent=15 // pred_region
          %s128 = sand.u32 %s36, 1
          %s129 = scalar_lea.sflag [#allocation5], %s128
          %s130 = sand.u32 %s36, 1
          %s131 = smul.addr %s130, 8
          %s132 = scalar_lea.vmem [#allocation4], %s131
          %134 = vsyncadd %s129, 0
          %s135 = smul.addr %s26, 8
          %s136 = scalar_lea.hbm %s1, %s135
          %s138 = sshll.u32 %s136, 4
          %s139 = int_to_ptr.hbm [resolvable:$true] %s138
          %s140 = sshll.u32 %s132, 4
          %s141 = int_to_ptr.vmem [resolvable:$true] %s140
          %143 = dma.hbm_to_vmem [thread:$0]  %s139, 128, %s141, %s129
        $region20: #{tpu_custom_call.1} parent=15 // pred_fallthru
          _
        // Predicated region
        $region21: #{tpu_custom_call.1} parent=15 // pred_check
          %p144 = pneg %p74
        $region22: #{tpu_custom_call.1} parent=15 // pred_check_branch
          %146 = sbr.rel (%p144) target = $region24
        $region23: #{tpu_custom_call.1} parent=15 // pred_region
          %s147 = sand.u32 %s64, 1
          %s148 = scalar_lea.sflag [#allocation8], %s147
          %s149 = sand.u32 %s64, 1
          %s150 = scalar_lea.vmem [#allocation7], %s149
          %s151 = sld [smem:[#allocation3 + %s26]]
          %153 = vsyncadd %s148, 0
          %s154 = scalar_lea.hbm %s2, %s151
          %s156 = sshll.u32 %s154, 4
          %s157 = int_to_ptr.hbm [resolvable:$true] %s156
          %s158 = sshll.u32 %s150, 4
          %s159 = int_to_ptr.vmem [resolvable:$true] %s158
          %161 = dma.hbm_to_vmem [thread:$0]  %s157, 16, %s159, %s148
        $region24: #{tpu_custom_call.1} parent=15 // pred_fallthru
          _
      $region16: #{tpu_custom_call.1} parent=5 // pred_fallthru
        _
      %p162 = scmp.le.s32.totalorder 1, %s26
      %p163 = scmp.lt.s32.totalorder %s26, 3
      %p164 = pnand %p162, %p163
      %p165 = pneg %p164
      // Predicated region
      $region25: #{tpu_custom_call.1} parent=5 // pred_check
        _
      $region26: #{tpu_custom_call.1} parent=5 // pred_check_branch
        %167 = sbr.rel (%p164) target = $region28
      $region27: #{tpu_custom_call.1} parent=5 // pred_region
        %s168 = ssub.s32 %s26, 1
        %s169 = sand.u32 %s39, 1
        %s170 = scalar_lea.sflag [#allocation5], %s169
        %s171 = sand.u32 %s39, 1
        %s172 = smul.addr %s171, 8
        %s173 = scalar_lea.vmem [#allocation4], %s172
        // Predicated region
        $region29: #{tpu_custom_call.1} parent=27 // pred_check
          %p174 = pneg %p52
        $region30: #{tpu_custom_call.1} parent=27 // pred_check_branch
          %176 = sbr.rel (%p174) target = $region32
        $region31: #{tpu_custom_call.1} parent=27 // pred_region
          %178 = dma.done %s170, 128
        $region32: #{tpu_custom_call.1} parent=27 // pred_fallthru
          _
        %s179 = sand.u32 %s67, 1
        %s180 = scalar_lea.sflag [#allocation8], %s179
        %s181 = sand.u32 %s67, 1
        %s182 = scalar_lea.vmem [#allocation7], %s181
        // Predicated region
        $region33: #{tpu_custom_call.1} parent=27 // pred_check
          %p183 = pneg %p80
        $region34: #{tpu_custom_call.1} parent=27 // pred_check_branch
          %185 = sbr.rel (%p183) target = $region36
        $region35: #{tpu_custom_call.1} parent=27 // pred_region
          %187 = dma.done %s180, 16
        $region36: #{tpu_custom_call.1} parent=27 // pred_fallthru
          _
        %s188 = sand.u32 %s39, 1
        %s189 = scalar_lea.sflag [#allocation5], %s188
        %s190 = sand.u32 %s39, 1
        %s191 = smul.addr %s190, 8
        %s192 = scalar_lea.vmem [#allocation4], %s191
        %p193 = pneg %p52
        %p194 = pneg %p49
        %s195 = sand.u32 %s67, 1
        %s196 = scalar_lea.sflag [#allocation8], %s195
        %s197 = sand.u32 %s67, 1
        %s198 = scalar_lea.vmem [#allocation7], %s197
        %p199 = pneg %p80
        %p200 = pneg %p77
        %p201 = pneg %p106
        %p202 = pneg %p103
        %s203 = sand.u32 %s93, 1
        %s204 = scalar_lea.sflag [#allocation6], %s203
        %s205 = sand.u32 %s93, 1
        %s206 = smul.addr %s205, 8
        %s207 = scalar_lea.vmem [#allocation9], %s206
        %s208 = sld [smem:[#allocation3 + %s31]]
        %v209 = vld [vmem:[%s173] sm:$0xff]
        %v210 = vld [vmem:[%s182] sm:$0x1]
        %v212 = vperm.slane %v210, 0
        %v214 = vmul.f32 %v209, %v212
        %215 = vst [vmem:[%s207] sm:$0xff] %v214
        %s216 = sand.u32 %s93, 1
        %s217 = scalar_lea.sflag [#allocation6], %s216
        %s218 = sand.u32 %s93, 1
        %s219 = smul.addr %s218, 8
        %s220 = scalar_lea.vmem [#allocation9], %s219
        // Predicated region
        $region37: #{tpu_custom_call.1} parent=27 // pred_check
          %p221 = pneg %p103
        $region38: #{tpu_custom_call.1} parent=27 // pred_check_branch
          %223 = sbr.rel (%p221) target = $region40
        $region39: #{tpu_custom_call.1} parent=27 // pred_region
          %225 = vsyncadd %s217, 0
          %s226 = smul.addr %s31, 8
          %s227 = scalar_lea.hbm %s3, %s226
          %s229 = sshll.u32 %s220, 4
          %s230 = int_to_ptr.vmem [resolvable:$true] %s229
          %s231 = sshll.u32 %s227, 4
          %s232 = int_to_ptr.hbm [resolvable:$true] %s231
          %234 = dma.vmem_to_hbm [thread:$0]  %s230, 128, %s232, %s217
        $region40: #{tpu_custom_call.1} parent=27 // pred_fallthru
          _
      $region28: #{tpu_custom_call.1} parent=5 // pred_fallthru
        _
      %p235 = scmp.le.s32.totalorder 2, %s26
      // Predicated region
      $region41: #{tpu_custom_call.1} parent=5 // pred_check
        %p236 = pneg %p235
      $region42: #{tpu_custom_call.1} parent=5 // pred_check_branch
        %238 = sbr.rel (%p236) target = $region44
      $region43: #{tpu_custom_call.1} parent=5 // pred_region
        %s239 = ssub.s32 %s26, 2
        // Predicated region
        $region45: #{tpu_custom_call.1} parent=43 // pred_check
          %p240 = pneg %p109
        $region46: #{tpu_custom_call.1} parent=43 // pred_check_branch
          %242 = sbr.rel (%p240) target = $region48
        $region47: #{tpu_custom_call.1} parent=43 // pred_region
          %s243 = sand.u32 %s94, 1
          %s244 = scalar_lea.sflag [#allocation6], %s243
          %s245 = sand.u32 %s94, 1
          %s246 = smul.addr %s245, 8
          %s247 = scalar_lea.vmem [#allocation9], %s246
          %249 = dma.done %s244, 128
        $region48: #{tpu_custom_call.1} parent=43 // pred_fallthru
          _
      $region44: #{tpu_custom_call.1} parent=5 // pred_fallthru
        _
    $region6: #{tpu_custom_call.1} parent=1 // loop_footer
      %s30 = sadd.s32 1, %s26
    $region7: #{tpu_custom_call.1} parent=1 // loop_footer_branch
      %25 = sbr.rel target = $region3
    $region8: #{tpu_custom_call.1} parent=1 // loop_exit
      _
    %250 = vsyncpa [#allocation5], 1
    %s251 = scalar_lea.sflag [#allocation5], 1
    %252 = vsyncpa %s251, 1
    %253 = vsyncpa [#allocation8], 1
    %s254 = scalar_lea.sflag [#allocation8], 1
    %255 = vsyncpa %s254, 1
    %256 = vsyncpa [#allocation6], 1
    %s257 = scalar_lea.sflag [#allocation6], 1
    %258 = vsyncpa %s257, 1

</llo_original>
